<compile_context>
chip_gen: v6e
topology: v6e:2x2x1
jax: 0.10.0
libtpu: 0.0.40
codegen_flags: <defaults>
</compile_context>

<pallas_src>
import functools

import numpy as np
import jax
import jax.numpy as jnp
from jax.experimental import pallas as pl
from jax.experimental.pallas import tpu as pltpu

_EPS = 1e-5


# ---------------------------------------------------------------------------
# Fused kernel: 1x1 expand + BN + ReLU6 -> 3x3 depthwise (stride-1 taps) + BN
#               + ReLU6 -> 1x1 project + BN (+ residual).
# One grid step == one batch element; everything channels-major in VMEM.
# ---------------------------------------------------------------------------
def _fused_kernel(x_ref, w_e_ref, b1_ref, w_dw_ref, dw_mask_ref, b2_ref,
                  w_p_ref, b3_ref, o_ref, *, W, HW, use_res):
    """Shapes (channels on sublanes, flattened spatial H*W on lanes):
       x_ref    (1, inp, HW)     w_e_ref  (hidden, inp)    b1_ref (hidden, 1)
       w_dw_ref (9, hidden, 1)   dw_mask  (9, 1, HW)       b2_ref (hidden, 1)
       w_p_ref  (oup, hidden)    b3_ref   (oup, 1)         o_ref  (1, oup, HW)
    """
    x = x_ref[0]                                            # (inp, HW), f32

    # ---- 1x1 expand conv (BN scale folded) + ReLU6: MXU, lane-dense N=HW ---
    h = jnp.dot(w_e_ref[...], x, preferred_element_type=jnp.float32)
    h = jnp.clip(h + b1_ref[...], 0.0, 6.0)                 # (hidden, HW)

    # ---- 3x3 depthwise conv (stride-1 taps) via lane rolls + border masks --
    # tap (di, dj) needs h[c, i+di, j+dj] == h_flat[c, p + di*W + dj], realised
    # as an XLU lane roll of the flat spatial axis; positions whose (i+di,j+dj)
    # fall outside the image are zeroed by a precomputed border mask.
    acc = None
    k = 0
    for di in (-1, 0, 1):
        for dj in (-1, 0, 1):
            s = di * W + dj
            if di == 0 and dj == 0:
                t = h                                       # center tap: no mask
            else:
                t = pltpu.roll(h, (-s) % HW, axis=1) * dw_mask_ref[k]
            term = t * w_dw_ref[k]                          # (hidden,1) per-chan wt
            acc = term if acc is None else acc + term
            k += 1
    d = jnp.clip(acc + b2_ref[...], 0.0, 6.0)               # (hidden, HW)

    # ---- 1x1 projection (BN folded) + bias (+ fused residual) --------------
    o = jnp.dot(w_p_ref[...], d, preferred_element_type=jnp.float32)
    o = o + b3_ref[...]
    if use_res:                                             # stride==1 and inp==oup
        o = o + x
    o_ref[...] = o[None].astype(o_ref.dtype)


# ---------------------------------------------------------------------------
# Precomputed (compile-time constant) border masks for the 9 depthwise taps.
# ---------------------------------------------------------------------------
def _depthwise_border_masks(h, w):
    pos = np.arange(h * w)
    row = pos // w
    col = pos % w
    masks = np.zeros((9, 1, h * w), np.float32)
    k = 0
    for di in (-1, 0, 1):
        for dj in (-1, 0, 1):
            ok = ((row + di >= 0) & (row + di < h) &
                  (col + dj >= 0) & (col + dj < w))
            masks[k, 0] = ok.astype(np.float32)
            k += 1
    return masks


# ---------------------------------------------------------------------------
# Parameters (deterministic, synthetic), channels-major, BN folded at prep time
# ---------------------------------------------------------------------------
def init_params(key, inp, oup, expand_ratio=6):
    hidden = int(round(inp * expand_ratio))
    ks = jax.random.split(key, 15)

    def bn(k0, k1, k2, k3, ch):
        gamma = 1.0 + 0.1 * jax.random.normal(k0, (ch,), jnp.float32)
        beta = 0.1 * jax.random.normal(k1, (ch,), jnp.float32)
        mean = 0.1 * jax.random.normal(k2, (ch,), jnp.float32)
        var = jnp.abs(jax.random.normal(k3, (ch,), jnp.float32)) + 0.5
        scale = gamma / jnp.sqrt(var + _EPS)
        bias = beta - mean * scale
        return scale, bias

    # Channels-major: (out_ch, in_ch) for 1x1 convs, (3,3,hidden) depthwise.
    w_expand = 0.2 * jax.random.normal(ks[0], (hidden, inp), jnp.float32)
    s1, b1 = bn(ks[1], ks[2], ks[3], ks[4], hidden)
    w_dw = 0.2 * jax.random.normal(ks[5], (3, 3, hidden), jnp.float32)
    s2, b2 = bn(ks[6], ks[7], ks[8], ks[9], hidden)
    w_proj = 0.2 * jax.random.normal(ks[10], (oup, hidden), jnp.float32)
    s3, b3 = bn(ks[11], ks[12], ks[13], ks[14], oup)

    # Inference-time BN folding: only bias add + ReLU6 stay in the kernel.
    w_e_f = w_expand * s1[:, None]
    w_dw_f = w_dw * s2[None, None, :]
    w_p_f = w_proj * s3[:, None]

    return dict(
        w_e=w_e_f.astype(jnp.float32),
        b1=b1.reshape(hidden, 1).astype(jnp.float32),
        w_dw=w_dw_f.reshape(9, hidden, 1).astype(jnp.float32),  # tap-major
        b2=b2.reshape(hidden, 1).astype(jnp.float32),
        w_p=w_p_f.astype(jnp.float32),
        b3=b3.reshape(oup, 1).astype(jnp.float32),
    )


# ---------------------------------------------------------------------------
# Forward pass (NCHW in / NCHW out, like the PyTorch module) — no transposes.
# ---------------------------------------------------------------------------
def inverted_residual_forward(x_nchw, params, stride):
    n, c, h, w = x_nchw.shape
    hidden = params["b1"].shape[0]
    oup = params["b3"].shape[0]
    hw = h * w
    use_res = (stride == 1 and c == oup)

    # NCHW -> (N, C, H*W): a free reshape; H*W sits on the lane axis.
    x = x_nchw.reshape(n, c, hw).astype(jnp.float32)
    dw_mask = jnp.asarray(_depthwise_border_masks(h, w))

    kern = functools.partial(_fused_kernel, W=w, HW=hw, use_res=use_res)

    # Advisory cost estimate for XLA's scheduler around the custom call.
    flops = n * (2 * hw * c * hidden            # 1x1 expand
                 + 18 * hw * hidden             # 3x3 depthwise (9 MACs/pos/ch)
                 + 2 * hw * hidden * oup        # 1x1 project
                 + (hw * oup if use_res else 0))
    weight_bytes = 4 * (hidden * c + hidden + 9 * hidden + 9 * hw
                        + hidden + oup * hidden + oup)
    io_bytes = 4 * n * (c * hw + oup * hw)
    cost = pl.CostEstimate(flops=flops, transcendentals=0,
                           bytes_accessed=io_bytes + weight_bytes)

    # VMEM budget derived from actual buffers: double-buffered in/out blocks +
    # weights + generous headroom for the live f32 intermediates.
    per_step_io = 4 * (c * hw + oup * hw)
    live = 12 * 4 * hidden * hw
    vmem_limit = int(min(64 * 2 ** 20,
                         max(8 * 2 ** 20,
                             2 * (2 * per_step_io + 2 * weight_bytes + live))))

    out_flat = pl.pallas_call(
        kern,
        out_shape=jax.ShapeDtypeStruct((n, oup, hw), jnp.float32),
        grid=(n,),
        in_specs=[
            pl.BlockSpec((1, c, hw), lambda b: (b, 0, 0)),        # x
            pl.BlockSpec((hidden, c), lambda b: (0, 0)),          # w_expand
            pl.BlockSpec((hidden, 1), lambda b: (0, 0)),          # b1
            pl.BlockSpec((9, hidden, 1), lambda b: (0, 0, 0)),    # w_dw per tap
            pl.BlockSpec((9, 1, hw), lambda b: (0, 0, 0)),        # border masks
            pl.BlockSpec((hidden, 1), lambda b: (0, 0)),          # b2
            pl.BlockSpec((oup, hidden), lambda b: (0, 0)),        # w_proj
            pl.BlockSpec((oup, 1), lambda b: (0, 0)),             # b3
        ],
        out_specs=pl.BlockSpec((1, oup, hw), lambda b: (b, 0, 0)),
        compiler_params=pltpu.CompilerParams(
            dimension_semantics=("parallel",),
            vmem_limit_bytes=vmem_limit),
        cost_estimate=cost,
    )(x, params["w_e"], params["b1"], params["w_dw"], dw_mask,
      params["b2"], params["w_p"], params["b3"])

    out = out_flat.reshape(n, oup, h, w)                     # free reshape (NCHW)
    if stride > 1:
        # 1x1 projection commutes with spatial subsampling, so the stride-2
        # result is exactly the dense stride-1 output subsampled.
        out = out[:, :, ::stride, ::stride]
    return out


# ---------------------------------------------------------------------------
# Pure-JAX reference (same folded params) for the numerical check
# ---------------------------------------------------------------------------
def _reference_forward(x_nchw, params, stride):
    n, c, h, w = x_nchw.shape
    hidden = params["b1"].shape[0]
    oup = params["b3"].shape[0]
    x = x_nchw.astype(jnp.float32)

    hid = jnp.einsum("nchw,dc->ndhw", x, params["w_e"], precision="highest")
    hid = jnp.clip(hid + params["b1"].reshape(1, hidden, 1, 1), 0.0, 6.0)

    hp = jnp.pad(hid, ((0, 0), (0, 0), (1, 1), (1, 1)))
    out_h = (h - 1) // stride + 1
    out_w = (w - 1) // stride + 1
    w_dw = params["w_dw"].reshape(3, 3, hidden)
    acc = jnp.zeros((n, hidden, out_h, out_w), jnp.float32)
    for di in range(3):
        for dj in range(3):
            win = hp[:, :, di:di + (out_h - 1) * stride + 1:stride,
                           dj:dj + (out_w - 1) * stride + 1:stride]
            acc = acc + win * w_dw[di, dj].reshape(1, hidden, 1, 1)
    d = jnp.clip(acc + params["b2"].reshape(1, hidden, 1, 1), 0.0, 6.0)

    o = jnp.einsum("ndhw,od->nohw", d, params["w_p"], precision="highest")
    o = o + params["b3"].reshape(1, oup, 1, 1)
    if stride == 1 and c == oup:
        o = o + x
    return o


# ---------------------------------------------------------------------------
if __name__ == "__main__":
    key = jax.random.PRNGKey(0)
    kx, kp, kx2, kp2 = jax.random.split(key, 4)
    fwd = jax.jit(inverted_residual_forward, static_argnums=2)

    # Case 1: InvertedResidual(inp=4, oup=4, stride=1, h_w=16) -> residual path
    n, h, w = 2, 16, 16
    inp, oup, stride = 4, 4, 1
    x = jax.random.normal(kx, (n, inp, h, w), jnp.float32)       # NCHW
    params = init_params(kp, inp, oup, expand_ratio=6)
    out = jax.block_until_ready(fwd(x, params, stride))
    assert out.shape == (n, oup, h, w), out.shape
    assert bool(jnp.all(jnp.isfinite(out)))
    ref = _reference_forward(x, params, stride)
    err = float(jnp.max(jnp.abs(out - ref)))
    rel = err / (float(jnp.max(jnp.abs(ref))) + 1e-6)
    assert rel < 1e-2, f"stride-1 max-norm relative err {rel}"

    # Case 2: stride=2, inp != oup (no residual, downsampled output)
    inp2, oup2, stride2 = 4, 8, 2
    x2 = jax.random.normal(kx2, (n, inp2, h, w), jnp.float32)
    params2 = init_params(kp2, inp2, oup2, expand_ratio=6)
    out2 = jax.block_until_ready(fwd(x2, params2, stride2))
    assert out2.shape == (n, oup2, h // 2, w // 2), out2.shape
    assert bool(jnp.all(jnp.isfinite(out2)))
    ref2 = _reference_forward(x2, params2, stride2)
    err2 = float(jnp.max(jnp.abs(out2 - ref2)))
    rel2 = err2 / (float(jnp.max(jnp.abs(ref2))) + 1e-6)
    assert rel2 < 1e-2, f"stride-2 max-norm relative err {rel2}"

    print("KERNEL_OK")
</pallas_src>

<mosaic_0001>
module attributes {stable_mosaic.version = 11 : i64} {
  func.func @_fused_kernel(%arg0: i32, %arg1: memref<1x4x256xf32, #tpu.memory_space<vmem>>, %arg2: memref<24x4xf32, #tpu.memory_space<vmem>>, %arg3: memref<24x1xf32, #tpu.memory_space<vmem>>, %arg4: memref<9x24x1xf32, #tpu.memory_space<vmem>>, %arg5: memref<9x1x256xf32, #tpu.memory_space<vmem>>, %arg6: memref<24x1xf32, #tpu.memory_space<vmem>>, %arg7: memref<4x24xf32, #tpu.memory_space<vmem>>, %arg8: memref<4x1xf32, #tpu.memory_space<vmem>>, %arg9: memref<1x4x256xf32, #tpu.memory_space<vmem>>) attributes {dimension_semantics = [#tpu.dimension_semantics<parallel>], iteration_bounds = array<i64: 2>, scalar_prefetch = 0 : i64, scratch_operands = 0 : i64, tpu.core_type = #tpu.core_type<tc>, window_params = [{transform_indices = @transform_0, window_bounds = array<i64: 1, 4, 256>}, {pipeline_mode = #tpu.pipeline_mode<synchronous>, transform_indices = @transform_1, window_bounds = array<i64: 24, 4>}, {pipeline_mode = #tpu.pipeline_mode<synchronous>, transform_indices = @transform_2, window_bounds = array<i64: 24, 1>}, {pipeline_mode = #tpu.pipeline_mode<synchronous>, transform_indices = @transform_3, window_bounds = array<i64: 9, 24, 1>}, {pipeline_mode = #tpu.pipeline_mode<synchronous>, transform_indices = @transform_4, window_bounds = array<i64: 9, 1, 256>}, {pipeline_mode = #tpu.pipeline_mode<synchronous>, transform_indices = @transform_5, window_bounds = array<i64: 24, 1>}, {pipeline_mode = #tpu.pipeline_mode<synchronous>, transform_indices = @transform_6, window_bounds = array<i64: 4, 24>}, {pipeline_mode = #tpu.pipeline_mode<synchronous>, transform_indices = @transform_7, window_bounds = array<i64: 4, 1>}, {transform_indices = @transform_8, window_bounds = array<i64: 1, 4, 256>}]} {
    %c0 = arith.constant 0 : index
    %c0_0 = arith.constant 0 : index
    %c0_1 = arith.constant 0 : index
    %0 = vector.load %arg1[%c0, %c0_0, %c0_1] : memref<1x4x256xf32, #tpu.memory_space<vmem>>, vector<1x4x256xf32>
    %1 = vector.shape_cast %0 : vector<1x4x256xf32> to vector<4x256xf32>
    %c0_2 = arith.constant 0 : index
    %c0_3 = arith.constant 0 : index
    %2 = vector.load %arg2[%c0_2, %c0_3] : memref<24x4xf32, #tpu.memory_space<vmem>>, vector<24x4xf32>
    %cst = arith.constant dense<0.000000e+00> : vector<24x256xf32>
    %3 = tpu.matmul %2, %1, %cst {dimension_numbers = #tpu.dot_dimension_numbers<[1], [0], [0], [1], [0, 0, 1, 1], [], []>} : vector<24x4xf32>, vector<4x256xf32>, vector<24x256xf32> -> vector<24x256xf32>
    %c0_4 = arith.constant 0 : index
    %c0_5 = arith.constant 0 : index
    %4 = vector.load %arg3[%c0_4, %c0_5] : memref<24x1xf32, #tpu.memory_space<vmem>>, vector<24x1xf32>
    %5 = vector.broadcast %4 : vector<24x1xf32> to vector<24x256xf32>
    %6 = arith.addf %3, %5 : vector<24x256xf32>
    %cst_6 = arith.constant 0.000000e+00 : f32
    %cst_7 = arith.constant 6.000000e+00 : f32
    %7 = vector.broadcast %cst_6 : f32 to vector<24x256xf32>
    %8 = arith.maximumf %7, %6 : vector<24x256xf32>
    %9 = vector.broadcast %cst_7 : f32 to vector<24x256xf32>
    %10 = arith.minimumf %9, %8 : vector<24x256xf32>
    %c17_i32 = arith.constant 17 : i32
    %11 = tpu.dynamic_rotate %10 by %c17_i32 dim 1 : vector<24x256xf32>, i32 -> vector<24x256xf32>
    %c0_8 = arith.constant 0 : index
    %c0_9 = arith.constant 0 : index
    %c0_10 = arith.constant 0 : index
    %12 = vector.load %arg5[%c0_8, %c0_9, %c0_10] : memref<9x1x256xf32, #tpu.memory_space<vmem>>, vector<1x1x256xf32>
    %13 = vector.shape_cast %12 : vector<1x1x256xf32> to vector<1x256xf32>
    %14 = vector.broadcast %13 : vector<1x256xf32> to vector<24x256xf32>
    %15 = arith.mulf %11, %14 : vector<24x256xf32>
    %c0_11 = arith.constant 0 : index
    %c0_12 = arith.constant 0 : index
    %c0_13 = arith.constant 0 : index
    %16 = vector.load %arg4[%c0_11, %c0_12, %c0_13] : memref<9x24x1xf32, #tpu.memory_space<vmem>>, vector<1x24x1xf32>
    %17 = vector.shape_cast %16 : vector<1x24x1xf32> to vector<24x1xf32>
    %18 = vector.broadcast %17 : vector<24x1xf32> to vector<24x256xf32>
    %19 = arith.mulf %15, %18 : vector<24x256xf32>
    %c16_i32 = arith.constant 16 : i32
    %20 = tpu.dynamic_rotate %10 by %c16_i32 dim 1 : vector<24x256xf32>, i32 -> vector<24x256xf32>
    %c1 = arith.constant 1 : index
    %c0_14 = arith.constant 0 : index
    %c0_15 = arith.constant 0 : index
    %21 = vector.load %arg5[%c1, %c0_14, %c0_15] : memref<9x1x256xf32, #tpu.memory_space<vmem>>, vector<1x1x256xf32>
    %22 = vector.shape_cast %21 : vector<1x1x256xf32> to vector<1x256xf32>
    %23 = vector.broadcast %22 : vector<1x256xf32> to vector<24x256xf32>
    %24 = arith.mulf %20, %23 : vector<24x256xf32>
    %c1_16 = arith.constant 1 : index
    %c0_17 = arith.constant 0 : index
    %c0_18 = arith.constant 0 : index
    %25 = vector.load %arg4[%c1_16, %c0_17, %c0_18] : memref<9x24x1xf32, #tpu.memory_space<vmem>>, vector<1x24x1xf32>
    %26 = vector.shape_cast %25 : vector<1x24x1xf32> to vector<24x1xf32>
    %27 = vector.broadcast %26 : vector<24x1xf32> to vector<24x256xf32>
    %28 = arith.mulf %24, %27 : vector<24x256xf32>
    %29 = arith.addf %19, %28 : vector<24x256xf32>
    %c15_i32 = arith.constant 15 : i32
    %30 = tpu.dynamic_rotate %10 by %c15_i32 dim 1 : vector<24x256xf32>, i32 -> vector<24x256xf32>
    %c2 = arith.constant 2 : index
    %c0_19 = arith.constant 0 : index
    %c0_20 = arith.constant 0 : index
    %31 = vector.load %arg5[%c2, %c0_19, %c0_20] : memref<9x1x256xf32, #tpu.memory_space<vmem>>, vector<1x1x256xf32>
    %32 = vector.shape_cast %31 : vector<1x1x256xf32> to vector<1x256xf32>
    %33 = vector.broadcast %32 : vector<1x256xf32> to vector<24x256xf32>
    %34 = arith.mulf %30, %33 : vector<24x256xf32>
    %c2_21 = arith.constant 2 : index
    %c0_22 = arith.constant 0 : index
    %c0_23 = arith.constant 0 : index
    %35 = vector.load %arg4[%c2_21, %c0_22, %c0_23] : memref<9x24x1xf32, #tpu.memory_space<vmem>>, vector<1x24x1xf32>
    %36 = vector.shape_cast %35 : vector<1x24x1xf32> to vector<24x1xf32>
    %37 = vector.broadcast %36 : vector<24x1xf32> to vector<24x256xf32>
    %38 = arith.mulf %34, %37 : vector<24x256xf32>
    %39 = arith.addf %29, %38 : vector<24x256xf32>
    %c1_i32 = arith.constant 1 : i32
    %40 = tpu.dynamic_rotate %10 by %c1_i32 dim 1 : vector<24x256xf32>, i32 -> vector<24x256xf32>
    %c3 = arith.constant 3 : index
    %c0_24 = arith.constant 0 : index
    %c0_25 = arith.constant 0 : index
    %41 = vector.load %arg5[%c3, %c0_24, %c0_25] : memref<9x1x256xf32, #tpu.memory_space<vmem>>, vector<1x1x256xf32>
    %42 = vector.shape_cast %41 : vector<1x1x256xf32> to vector<1x256xf32>
    %43 = vector.broadcast %42 : vector<1x256xf32> to vector<24x256xf32>
    %44 = arith.mulf %40, %43 : vector<24x256xf32>
    %c3_26 = arith.constant 3 : index
    %c0_27 = arith.constant 0 : index
    %c0_28 = arith.constant 0 : index
    %45 = vector.load %arg4[%c3_26, %c0_27, %c0_28] : memref<9x24x1xf32, #tpu.memory_space<vmem>>, vector<1x24x1xf32>
    %46 = vector.shape_cast %45 : vector<1x24x1xf32> to vector<24x1xf32>
    %47 = vector.broadcast %46 : vector<24x1xf32> to vector<24x256xf32>
    %48 = arith.mulf %44, %47 : vector<24x256xf32>
    %49 = arith.addf %39, %48 : vector<24x256xf32>
    %c4 = arith.constant 4 : index
    %c0_29 = arith.constant 0 : index
    %c0_30 = arith.constant 0 : index
    %50 = vector.load %arg4[%c4, %c0_29, %c0_30] : memref<9x24x1xf32, #tpu.memory_space<vmem>>, vector<1x24x1xf32>
    %51 = vector.shape_cast %50 : vector<1x24x1xf32> to vector<24x1xf32>
    %52 = vector.broadcast %51 : vector<24x1xf32> to vector<24x256xf32>
    %53 = arith.mulf %10, %52 : vector<24x256xf32>
    %54 = arith.addf %49, %53 : vector<24x256xf32>
    %c255_i32 = arith.constant 255 : i32
    %55 = tpu.dynamic_rotate %10 by %c255_i32 dim 1 : vector<24x256xf32>, i32 -> vector<24x256xf32>
    %c5 = arith.constant 5 : index
    %c0_31 = arith.constant 0 : index
    %c0_32 = arith.constant 0 : index
    %56 = vector.load %arg5[%c5, %c0_31, %c0_32] : memref<9x1x256xf32, #tpu.memory_space<vmem>>, vector<1x1x256xf32>
    %57 = vector.shape_cast %56 : vector<1x1x256xf32> to vector<1x256xf32>
    %58 = vector.broadcast %57 : vector<1x256xf32> to vector<24x256xf32>
    %59 = arith.mulf %55, %58 : vector<24x256xf32>
    %c5_33 = arith.constant 5 : index
    %c0_34 = arith.constant 0 : index
    %c0_35 = arith.constant 0 : index
    %60 = vector.load %arg4[%c5_33, %c0_34, %c0_35] : memref<9x24x1xf32, #tpu.memory_space<vmem>>, vector<1x24x1xf32>
    %61 = vector.shape_cast %60 : vector<1x24x1xf32> to vector<24x1xf32>
    %62 = vector.broadcast %61 : vector<24x1xf32> to vector<24x256xf32>
    %63 = arith.mulf %59, %62 : vector<24x256xf32>
    %64 = arith.addf %54, %63 : vector<24x256xf32>
    %c241_i32 = arith.constant 241 : i32
    %65 = tpu.dynamic_rotate %10 by %c241_i32 dim 1 : vector<24x256xf32>, i32 -> vector<24x256xf32>
    %c6 = arith.constant 6 : index
    %c0_36 = arith.constant 0 : index
    %c0_37 = arith.constant 0 : index
    %66 = vector.load %arg5[%c6, %c0_36, %c0_37] : memref<9x1x256xf32, #tpu.memory_space<vmem>>, vector<1x1x256xf32>
    %67 = vector.shape_cast %66 : vector<1x1x256xf32> to vector<1x256xf32>
    %68 = vector.broadcast %67 : vector<1x256xf32> to vector<24x256xf32>
    %69 = arith.mulf %65, %68 : vector<24x256xf32>
    %c6_38 = arith.constant 6 : index
    %c0_39 = arith.constant 0 : index
    %c0_40 = arith.constant 0 : index
    %70 = vector.load %arg4[%c6_38, %c0_39, %c0_40] : memref<9x24x1xf32, #tpu.memory_space<vmem>>, vector<1x24x1xf32>
    %71 = vector.shape_cast %70 : vector<1x24x1xf32> to vector<24x1xf32>
    %72 = vector.broadcast %71 : vector<24x1xf32> to vector<24x256xf32>
    %73 = arith.mulf %69, %72 : vector<24x256xf32>
    %74 = arith.addf %64, %73 : vector<24x256xf32>
    %c240_i32 = arith.constant 240 : i32
    %75 = tpu.dynamic_rotate %10 by %c240_i32 dim 1 : vector<24x256xf32>, i32 -> vector<24x256xf32>
    %c7 = arith.constant 7 : index
    %c0_41 = arith.constant 0 : index
    %c0_42 = arith.constant 0 : index
    %76 = vector.load %arg5[%c7, %c0_41, %c0_42] : memref<9x1x256xf32, #tpu.memory_space<vmem>>, vector<1x1x256xf32>
    %77 = vector.shape_cast %76 : vector<1x1x256xf32> to vector<1x256xf32>
    %78 = vector.broadcast %77 : vector<1x256xf32> to vector<24x256xf32>
    %79 = arith.mulf %75, %78 : vector<24x256xf32>
    %c7_43 = arith.constant 7 : index
    %c0_44 = arith.constant 0 : index
    %c0_45 = arith.constant 0 : index
    %80 = vector.load %arg4[%c7_43, %c0_44, %c0_45] : memref<9x24x1xf32, #tpu.memory_space<vmem>>, vector<1x24x1xf32>
    %81 = vector.shape_cast %80 : vector<1x24x1xf32> to vector<24x1xf32>
    %82 = vector.broadcast %81 : vector<24x1xf32> to vector<24x256xf32>
    %83 = arith.mulf %79, %82 : vector<24x256xf32>
    %84 = arith.addf %74, %83 : vector<24x256xf32>
    %c239_i32 = arith.constant 239 : i32
    %85 = tpu.dynamic_rotate %10 by %c239_i32 dim 1 : vector<24x256xf32>, i32 -> vector<24x256xf32>
    %c8 = arith.constant 8 : index
    %c0_46 = arith.constant 0 : index
    %c0_47 = arith.constant 0 : index
    %86 = vector.load %arg5[%c8, %c0_46, %c0_47] : memref<9x1x256xf32, #tpu.memory_space<vmem>>, vector<1x1x256xf32>
    %87 = vector.shape_cast %86 : vector<1x1x256xf32> to vector<1x256xf32>
    %88 = vector.broadcast %87 : vector<1x256xf32> to vector<24x256xf32>
    %89 = arith.mulf %85, %88 : vector<24x256xf32>
    %c8_48 = arith.constant 8 : index
    %c0_49 = arith.constant 0 : index
    %c0_50 = arith.constant 0 : index
    %90 = vector.load %arg4[%c8_48, %c0_49, %c0_50] : memref<9x24x1xf32, #tpu.memory_space<vmem>>, vector<1x24x1xf32>
    %91 = vector.shape_cast %90 : vector<1x24x1xf32> to vector<24x1xf32>
    %92 = vector.broadcast %91 : vector<24x1xf32> to vector<24x256xf32>
    %93 = arith.mulf %89, %92 : vector<24x256xf32>
    %94 = arith.addf %84, %93 : vector<24x256xf32>
    %c0_51 = arith.constant 0 : index
    %c0_52 = arith.constant 0 : index
    %95 = vector.load %arg6[%c0_51, %c0_52] : memref<24x1xf32, #tpu.memory_space<vmem>>, vector<24x1xf32>
    %96 = vector.broadcast %95 : vector<24x1xf32> to vector<24x256xf32>
    %97 = arith.addf %94, %96 : vector<24x256xf32>
    %cst_53 = arith.constant 0.000000e+00 : f32
    %cst_54 = arith.constant 6.000000e+00 : f32
    %98 = vector.broadcast %cst_53 : f32 to vector<24x256xf32>
    %99 = arith.maximumf %98, %97 : vector<24x256xf32>
    %100 = vector.broadcast %cst_54 : f32 to vector<24x256xf32>
    %101 = arith.minimumf %100, %99 : vector<24x256xf32>
    %c0_55 = arith.constant 0 : index
    %c0_56 = arith.constant 0 : index
    %102 = vector.load %arg7[%c0_55, %c0_56] : memref<4x24xf32, #tpu.memory_space<vmem>>, vector<4x24xf32>
    %cst_57 = arith.constant dense<0.000000e+00> : vector<4x256xf32>
    %103 = tpu.matmul %102, %101, %cst_57 {dimension_numbers = #tpu.dot_dimension_numbers<[1], [0], [0], [1], [0, 0, 1, 1], [], []>} : vector<4x24xf32>, vector<24x256xf32>, vector<4x256xf32> -> vector<4x256xf32>
    %c0_58 = arith.constant 0 : index
    %c0_59 = arith.constant 0 : index
    %104 = vector.load %arg8[%c0_58, %c0_59] : memref<4x1xf32, #tpu.memory_space<vmem>>, vector<4x1xf32>
    %105 = vector.broadcast %104 : vector<4x1xf32> to vector<4x256xf32>
    %106 = arith.addf %103, %105 : vector<4x256xf32>
    %107 = arith.addf %106, %1 : vector<4x256xf32>
    %108 = vector.shape_cast %107 : vector<4x256xf32> to vector<1x4x256xf32>
    %c0_60 = arith.constant 0 : index
    %c0_61 = arith.constant 0 : index
    %c0_62 = arith.constant 0 : index
    %109 = vector.load %arg9[%c0_60, %c0_61, %c0_62] : memref<1x4x256xf32, #tpu.memory_space<vmem>>, vector<1x4x256xf32>
    tpu.vector_store %arg9[%c0_60, %c0_61, %c0_62], %108 {strides = array<i32>} : memref<1x4x256xf32, #tpu.memory_space<vmem>>, vector<1x4x256xf32>,
    return
  }
  func.func @transform_0(%arg0: i32) -> (i32, i32, i32) {
    %c0_i32 = arith.constant 0 : i32
    %c0_i32_0 = arith.constant 0 : i32
    %c0_i32_1 = arith.constant 0 : i32
    return %arg0, %c0_i32, %c0_i32_0 : i32, i32, i32
  }
  func.func @transform_1(%arg0: i32) -> (i32, i32) {
    %c0_i32 = arith.constant 0 : i32
    %c0_i32_0 = arith.constant 0 : i32
    %c0_i32_1 = arith.constant 0 : i32
    return %c0_i32, %c0_i32_0 : i32, i32
  }
  func.func @transform_2(%arg0: i32) -> (i32, i32) {
    %c0_i32 = arith.constant 0 : i32
    %c0_i32_0 = arith.constant 0 : i32
    %c0_i32_1 = arith.constant 0 : i32
    return %c0_i32, %c0_i32_0 : i32, i32
  }
  func.func @transform_3(%arg0: i32) -> (i32, i32, i32) {
    %c0_i32 = arith.constant 0 : i32
    %c0_i32_0 = arith.constant 0 : i32
    %c0_i32_1 = arith.constant 0 : i32
    %c0_i32_2 = arith.constant 0 : i32
    return %c0_i32, %c0_i32_0, %c0_i32_1 : i32, i32, i32
  }
  func.func @transform_4(%arg0: i32) -> (i32, i32, i32) {
    %c0_i32 = arith.constant 0 : i32
    %c0_i32_0 = arith.constant 0 : i32
    %c0_i32_1 = arith.constant 0 : i32
    %c0_i32_2 = arith.constant 0 : i32
    return %c0_i32, %c0_i32_0, %c0_i32_1 : i32, i32, i32
  }
  func.func @transform_5(%arg0: i32) -> (i32, i32) {
    %c0_i32 = arith.constant 0 : i32
    %c0_i32_0 = arith.constant 0 : i32
    %c0_i32_1 = arith.constant 0 : i32
    return %c0_i32, %c0_i32_0 : i32, i32
  }
  func.func @transform_6(%arg0: i32) -> (i32, i32) {
    %c0_i32 = arith.constant 0 : i32
    %c0_i32_0 = arith.constant 0 : i32
    %c0_i32_1 = arith.constant 0 : i32
    return %c0_i32, %c0_i32_0 : i32, i32
  }
  func.func @transform_7(%arg0: i32) -> (i32, i32) {
    %c0_i32 = arith.constant 0 : i32
    %c0_i32_0 = arith.constant 0 : i32
    %c0_i32_1 = arith.constant 0 : i32
    return %c0_i32, %c0_i32_0 : i32, i32
  }
  func.func @transform_8(%arg0: i32) -> (i32, i32, i32) {
    %c0_i32 = arith.constant 0 : i32
    %c0_i32_0 = arith.constant 0 : i32
    %c0_i32_1 = arith.constant 0 : i32
    return %arg0, %c0_i32, %c0_i32_0 : i32, i32, i32
  }
}

</mosaic_0001>

<llo_original>
// kernel: inverted_residual_forward.1
$region0: #{inverted_residual_forward.1}
  #allocation0 [shape = 'u32[]', space=smem, size = 0x4, offset = 0x4, fixed_abs, tag = 'smem constant byte address 0x4 - core index']
  #allocation1 [shape = 'u32[144,128]{1,0:T(1,128)}', space=vmem, size = 0x12000, scoped, tag = 'internal scratch']
  %s0 = inlined_call_operand.vmem [shape: f32[2,4,256], index: 0, kind: input, shape index: {}]
  %s1 = inlined_call_operand.vmem [shape: f32[24,4], index: 1, kind: input, shape index: {}]
  %s2 = inlined_call_operand.vmem [shape: f32[24,1], index: 2, kind: input, shape index: {}]
  %s3 = inlined_call_operand.vmem [shape: f32[9,24,1], index: 3, kind: input, shape index: {}]
  %s4 = inlined_call_operand.vmem [shape: f32[9,1,256], index: 4, kind: input, shape index: {}]
  %s5 = inlined_call_operand.vmem [shape: f32[24,1], index: 5, kind: input, shape index: {}]
  %s6 = inlined_call_operand.vmem [shape: f32[4,24], index: 6, kind: input, shape index: {}]
  %s7 = inlined_call_operand.vmem [shape: f32[4,1], index: 7, kind: input, shape index: {}]
  %s8 = inlined_call_operand.vmem [shape: f32[2,4,256], index: 8, kind: output, shape index: {}]
  %s9 = sld [smem:[#allocation0]]
  $region65: #{inverted_residual_forward.1} parent=0
    _
  %s11 = ssub.s32 1, %s9
  %s12 = scalar_select 0, %s11, %s9
  loop: start=0, step=1, limit=4
  $region2: #{inverted_residual_forward.1} parent=0 // loop_pre_header
    _
  $region3: #{inverted_residual_forward.1} parent=0 // loop_header
    %s14 = sphi 0, %s18
    %p15 = scmp.ge.s32.totalorder %s14, 4
    %s24 = sphi 0, %s26
    %s27 = sphi 0, %s24
    %s28 = sphi 0, %s27
    %s44 = sphi 0, %s28
    %s48 = sphi 0, %s48
    %s50 = sphi 0, %s48
    %s51 = sphi 0, %s50
    %s65 = sphi 0, %s51
    %s69 = sphi 0, %s69
    %s71 = sphi 0, %s69
    %s72 = sphi 0, %s71
    %s86 = sphi 0, %s72
    %s90 = sphi 0, %s90
    %s92 = sphi 0, %s90
    %s93 = sphi 0, %s92
    %s107 = sphi 0, %s93
    %s111 = sphi 0, %s111
    %s113 = sphi 0, %s111
    %s114 = sphi 0, %s113
    %s128 = sphi 0, %s114
    %s132 = sphi 0, %s132
    %s134 = sphi 0, %s132
    %s135 = sphi 0, %s134
    %s149 = sphi 0, %s135
    %s153 = sphi 0, %s153
    %s155 = sphi 0, %s153
    %s156 = sphi 0, %s155
    %s170 = sphi 0, %s156
    %s174 = sphi 0, %s174
    %s176 = sphi 0, %s174
    %s177 = sphi 0, %s176
    %s191 = sphi 0, %s177
    %s197 = sphi 0, %s199
    %s200 = sphi 0, %s197
    %s201 = sphi 0, %s200
    %s217 = sphi 0, %s201
  $region4: #{inverted_residual_forward.1} parent=0 // loop_header_branch
    %17 = sbr.rel (%p15) target = $region8
  $region5: #{inverted_residual_forward.1} parent=0 // loop_body
    %s19 = ssub.s32 %s14, 1
    %s20 = ssub.s32 %s14, 2
    %s21 = sadd.s32 %s14, 1
    %s22 = ssub.s32 %s14, %s21
    %p23 = scmp.eq.s32.totalorder %s22, 0
    %s25 = sadd.s32 %s24, 1
    %s26 = scalar_select %p23, %s24, %s25
    %p29 = pneg %p23
    %p30 = scmp.eq.s32.totalorder %s14, 1
    %p31 = por %p29, %p30
    %p32 = scmp.ne.s32.totalorder %s24, %s27
    %p33 = scmp.eq.s32.totalorder %s14, 0
    %p34 = por %p32, %p33
    %p35 = scmp.ne.s32.totalorder %s24, %s27
    %p36 = scmp.eq.s32.totalorder %s19, 1
    %p37 = por %p35, %p36
    %p38 = scmp.ne.s32.totalorder %s27, %s28
    %p39 = scmp.eq.s32.totalorder %s19, 0
    %p40 = por %p38, %p39
    %p41 = scmp.ne.s32.totalorder %s27, %s28
    %p42 = scmp.eq.s32.totalorder %s20, 1
    %p43 = por %p41, %p42
    %p45 = scmp.ne.s32.totalorder %s28, %s44
    %p46 = scmp.eq.s32.totalorder %s20, 0
    %p47 = por %p45, %p46
    %s49 = sadd.s32 %s48, 1
    %p52 = scmp.eq.s32.totalorder %s14, 1
    %p53 = scmp.ne.s32.totalorder %s48, %s50
    %p54 = scmp.eq.s32.totalorder %s14, 0
    %p55 = por %p53, %p54
    %p56 = scmp.ne.s32.totalorder %s48, %s50
    %p57 = scmp.eq.s32.totalorder %s19, 1
    %p58 = por %p56, %p57
    %p59 = scmp.ne.s32.totalorder %s50, %s51
    %p60 = scmp.eq.s32.totalorder %s19, 0
    %p61 = por %p59, %p60
    %p62 = scmp.ne.s32.totalorder %s50, %s51
    %p63 = scmp.eq.s32.totalorder %s20, 1
    %p64 = por %p62, %p63
    %p66 = scmp.ne.s32.totalorder %s51, %s65
    %p67 = scmp.eq.s32.totalorder %s20, 0
    %p68 = por %p66, %p67
    %s70 = sadd.s32 %s69, 1
    %p73 = scmp.eq.s32.totalorder %s14, 1
    %p74 = scmp.ne.s32.totalorder %s69, %s71
    %p75 = scmp.eq.s32.totalorder %s14, 0
    %p76 = por %p74, %p75
    %p77 = scmp.ne.s32.totalorder %s69, %s71
    %p78 = scmp.eq.s32.totalorder %s19, 1
    %p79 = por %p77, %p78
    %p80 = scmp.ne.s32.totalorder %s71, %s72
    %p81 = scmp.eq.s32.totalorder %s19, 0
    %p82 = por %p80, %p81
    %p83 = scmp.ne.s32.totalorder %s71, %s72
    %p84 = scmp.eq.s32.totalorder %s20, 1
    %p85 = por %p83, %p84
    %p87 = scmp.ne.s32.totalorder %s72, %s86
    %p88 = scmp.eq.s32.totalorder %s20, 0
    %p89 = por %p87, %p88
    %s91 = sadd.s32 %s90, 1
    %p94 = scmp.eq.s32.totalorder %s14, 1
    %p95 = scmp.ne.s32.totalorder %s90, %s92
    %p96 = scmp.eq.s32.totalorder %s14, 0
    %p97 = por %p95, %p96
    %p98 = scmp.ne.s32.totalorder %s90, %s92
    %p99 = scmp.eq.s32.totalorder %s19, 1
    %p100 = por %p98, %p99
    %p101 = scmp.ne.s32.totalorder %s92, %s93
    %p102 = scmp.eq.s32.totalorder %s19, 0
    %p103 = por %p101, %p102
    %p104 = scmp.ne.s32.totalorder %s92, %s93
    %p105 = scmp.eq.s32.totalorder %s20, 1
    %p106 = por %p104, %p105
    %p108 = scmp.ne.s32.totalorder %s93, %s107
    %p109 = scmp.eq.s32.totalorder %s20, 0
    %p110 = por %p108, %p109
    %s112 = sadd.s32 %s111, 1
    %p115 = scmp.eq.s32.totalorder %s14, 1
    %p116 = scmp.ne.s32.totalorder %s111, %s113
    %p117 = scmp.eq.s32.totalorder %s14, 0
    %p118 = por %p116, %p117
    %p119 = scmp.ne.s32.totalorder %s111, %s113
    %p120 = scmp.eq.s32.totalorder %s19, 1
    %p121 = por %p119, %p120
    %p122 = scmp.ne.s32.totalorder %s113, %s114
    %p123 = scmp.eq.s32.totalorder %s19, 0
    %p124 = por %p122, %p123
    %p125 = scmp.ne.s32.totalorder %s113, %s114
    %p126 = scmp.eq.s32.totalorder %s20, 1
    %p127 = por %p125, %p126
    %p129 = scmp.ne.s32.totalorder %s114, %s128
    %p130 = scmp.eq.s32.totalorder %s20, 0
    %p131 = por %p129, %p130
    %s133 = sadd.s32 %s132, 1
    %p136 = scmp.eq.s32.totalorder %s14, 1
    %p137 = scmp.ne.s32.totalorder %s132, %s134
    %p138 = scmp.eq.s32.totalorder %s14, 0
    %p139 = por %p137, %p138
    %p140 = scmp.ne.s32.totalorder %s132, %s134
    %p141 = scmp.eq.s32.totalorder %s19, 1
    %p142 = por %p140, %p141
    %p143 = scmp.ne.s32.totalorder %s134, %s135
    %p144 = scmp.eq.s32.totalorder %s19, 0
    %p145 = por %p143, %p144
    %p146 = scmp.ne.s32.totalorder %s134, %s135
    %p147 = scmp.eq.s32.totalorder %s20, 1
    %p148 = por %p146, %p147
    %p150 = scmp.ne.s32.totalorder %s135, %s149
    %p151 = scmp.eq.s32.totalorder %s20, 0
    %p152 = por %p150, %p151
    %s154 = sadd.s32 %s153, 1
    %p157 = scmp.eq.s32.totalorder %s14, 1
    %p158 = scmp.ne.s32.totalorder %s153, %s155
    %p159 = scmp.eq.s32.totalorder %s14, 0
    %p160 = por %p158, %p159
    %p161 = scmp.ne.s32.totalorder %s153, %s155
    %p162 = scmp.eq.s32.totalorder %s19, 1
    %p163 = por %p161, %p162
    %p164 = scmp.ne.s32.totalorder %s155, %s156
    %p165 = scmp.eq.s32.totalorder %s19, 0
    %p166 = por %p164, %p165
    %p167 = scmp.ne.s32.totalorder %s155, %s156
    %p168 = scmp.eq.s32.totalorder %s20, 1
    %p169 = por %p167, %p168
    %p171 = scmp.ne.s32.totalorder %s156, %s170
    %p172 = scmp.eq.s32.totalorder %s20, 0
    %p173 = por %p171, %p172
    %s175 = sadd.s32 %s174, 1
    %p178 = scmp.eq.s32.totalorder %s14, 1
    %p179 = scmp.ne.s32.totalorder %s174, %s176
    %p180 = scmp.eq.s32.totalorder %s14, 0
    %p181 = por %p179, %p180
    %p182 = scmp.ne.s32.totalorder %s174, %s176
    %p183 = scmp.eq.s32.totalorder %s19, 1
    %p184 = por %p182, %p183
    %p185 = scmp.ne.s32.totalorder %s176, %s177
    %p186 = scmp.eq.s32.totalorder %s19, 0
    %p187 = por %p185, %p186
    %p188 = scmp.ne.s32.totalorder %s176, %s177
    %p189 = scmp.eq.s32.totalorder %s20, 1
    %p190 = por %p188, %p189
    %p192 = scmp.ne.s32.totalorder %s177, %s191
    %p193 = scmp.eq.s32.totalorder %s20, 0
    %p194 = por %p192, %p193
    %s195 = ssub.s32 %s14, %s21
    %p196 = scmp.eq.s32.totalorder %s195, 0
    %s198 = sadd.s32 %s197, 1
    %s199 = scalar_select %p196, %s197, %s198
    %p202 = pneg %p196
    %p203 = scmp.eq.s32.totalorder %s14, 1
    %p204 = por %p202, %p203
    %p205 = scmp.ne.s32.totalorder %s197, %s200
    %p206 = scmp.eq.s32.totalorder %s14, 0
    %p207 = por %p205, %p206
    %p208 = scmp.ne.s32.totalorder %s197, %s200
    %p209 = scmp.eq.s32.totalorder %s19, 1
    %p210 = por %p208, %p209
    %p211 = scmp.ne.s32.totalorder %s200, %s201
    %p212 = scmp.eq.s32.totalorder %s19, 0
    %p213 = por %p211, %p212
    %p214 = scmp.ne.s32.totalorder %s200, %s201
    %p215 = scmp.eq.s32.totalorder %s20, 1
    %p216 = por %p214, %p215
    %p218 = scmp.ne.s32.totalorder %s201, %s217
    %p219 = scmp.eq.s32.totalorder %s20, 0
    %p220 = por %p218, %p219
    %p221 = scmp.le.s32.totalorder 1, %s14
    %p222 = scmp.lt.s32.totalorder %s14, 3
    %p223 = pnand %p221, %p222
    %p224 = pneg %p223
    // Predicated region
    $region9: #{inverted_residual_forward.1} parent=5 // pred_check
      _
    $region10: #{inverted_residual_forward.1} parent=5 // pred_check_branch
      %226 = sbr.rel (%p223) target = $region12
    $region11: #{inverted_residual_forward.1} parent=5 // pred_region
      %s227 = ssub.s32 %s14, 1
      // Predicated region
      $region13: #{inverted_residual_forward.1} parent=11 // pred_check
        %p228 = pneg %p61
      $region14: #{inverted_residual_forward.1} parent=11 // pred_check_branch
        %230 = sbr.rel (%p228) target = $region16
      $region15: #{inverted_residual_forward.1} parent=11 // pred_region
        _
      $region16: #{inverted_residual_forward.1} parent=11 // pred_fallthru
        _
      // Predicated region
      $region17: #{inverted_residual_forward.1} parent=11 // pred_check
        %p231 = pneg %p82
      $region18: #{inverted_residual_forward.1} parent=11 // pred_check_branch
        %233 = sbr.rel (%p231) target = $region20
      $region19: #{inverted_residual_forward.1} parent=11 // pred_region
        _
      $region20: #{inverted_residual_forward.1} parent=11 // pred_fallthru
        _
      // Predicated region
      $region21: #{inverted_residual_forward.1} parent=11 // pred_check
        %p234 = pneg %p103
      $region22: #{inverted_residual_forward.1} parent=11 // pred_check_branch
        %236 = sbr.rel (%p234) target = $region24
      $region23: #{inverted_residual_forward.1} parent=11 // pred_region
        _
      $region24: #{inverted_residual_forward.1} parent=11 // pred_fallthru
        _
      // Predicated region
      $region25: #{inverted_residual_forward.1} parent=11 // pred_check
        %p237 = pneg %p124
      $region26: #{inverted_residual_forward.1} parent=11 // pred_check_branch
        %239 = sbr.rel (%p237) target = $region28
      $region27: #{inverted_residual_forward.1} parent=11 // pred_region
        _
      $region28: #{inverted_residual_forward.1} parent=11 // pred_fallthru
        _
      // Predicated region
      $region29: #{inverted_residual_forward.1} parent=11 // pred_check
        %p240 = pneg %p145
      $region30: #{inverted_residual_forward.1} parent=11 // pred_check_branch
        %242 = sbr.rel (%p240) target = $region32
      $region31: #{inverted_residual_forward.1} parent=11 // pred_region
        _
      $region32: #{inverted_residual_forward.1} parent=11 // pred_fallthru
        _
      // Predicated region
      $region33: #{inverted_residual_forward.1} parent=11 // pred_check
        %p243 = pneg %p166
      $region34: #{inverted_residual_forward.1} parent=11 // pred_check_branch
        %245 = sbr.rel (%p243) target = $region36
      $region35: #{inverted_residual_forward.1} parent=11 // pred_region
        _
      $region36: #{inverted_residual_forward.1} parent=11 // pred_fallthru
        _
      // Predicated region
      $region37: #{inverted_residual_forward.1} parent=11 // pred_check
        %p246 = pneg %p187
      $region38: #{inverted_residual_forward.1} parent=11 // pred_check_branch
        %248 = sbr.rel (%p246) target = $region40
      $region39: #{inverted_residual_forward.1} parent=11 // pred_region
        _
      $region40: #{inverted_residual_forward.1} parent=11 // pred_fallthru
        _
    $region12: #{inverted_residual_forward.1} parent=5 // pred_fallthru
      _
    %p249 = scmp.lt.s32.totalorder %s14, 2
    // Predicated region
    $region41: #{inverted_residual_forward.1} parent=5 // pred_check
      %p250 = pneg %p249
    $region42: #{inverted_residual_forward.1} parent=5 // pred_check_branch
      %252 = sbr.rel (%p250) target = $region44
    $region43: #{inverted_residual_forward.1} parent=5 // pred_region
      // Predicated region
      $region45: #{inverted_residual_forward.1} parent=43 // pred_check
        %p253 = pneg %p34
      $region46: #{inverted_residual_forward.1} parent=43 // pred_check_branch
        %255 = sbr.rel (%p253) target = $region48
      $region47: #{inverted_residual_forward.1} parent=43 // pred_region
        %p256 = scmp.lt.s32.totalorder %s14, 1
        %s257 = scalar_select %p256, %s14, 1
        %s258 = smul.addr %s257, 2
        %s259 = smul.addr %s258, 4
        %s260 = scalar_lea.vmem %s0, %s259
      $region48: #{inverted_residual_forward.1} parent=43 // pred_fallthru
        _
    $region44: #{inverted_residual_forward.1} parent=5 // pred_fallthru
      _
    %p261 = scmp.le.s32.totalorder 1, %s14
    %p262 = scmp.lt.s32.totalorder %s14, 3
    %p263 = pnand %p261, %p262
    %p264 = pneg %p263
    // Predicated region
    $region49: #{inverted_residual_forward.1} parent=5 // pred_check
      _
    $region50: #{inverted_residual_forward.1} parent=5 // pred_check_branch
      %266 = sbr.rel (%p263) target = $region52
    $region51: #{inverted_residual_forward.1} parent=5 // pred_region
      %s267 = ssub.s32 %s14, 1
      %p268 = scmp.lt.s32.totalorder %s19, 1
      %s269 = scalar_select %p268, %s19, 1
      %s270 = smul.addr %s269, 2
      %s271 = smul.addr %s270, 4
      %s272 = scalar_lea.vmem %s0, %s271
      %p273 = pneg %p40
      %p274 = pneg %p37
      %p275 = pneg %p61
      %p276 = pneg %p58
      %p277 = pneg %p82
      %p278 = pneg %p79
      %p279 = pneg %p103
      %p280 = pneg %p100
      %p281 = pneg %p124
      %p282 = pneg %p121
      %p283 = pneg %p145
      %p284 = pneg %p142
      %p285 = pneg %p166
      %p286 = pneg %p163
      %p287 = pneg %p187
      %p288 = pneg %p184
      %p289 = pneg %p213
      %p290 = pneg %p210
      %p291 = scmp.lt.s32.totalorder %s19, 1
      %s292 = scalar_select %p291, %s19, 1
      %s293 = smul.addr %s292, 2
      %s294 = smul.addr %s293, 4
      %s295 = scalar_lea.vmem %s8, %s294
      %p296 = scmp.lt.s32.totalorder %s19, 1
      %s297 = scalar_select %p296, %s19, 1
      %s298 = smul.addr %s297, 2
      %s299 = smul.addr %s298, 4
      %s300 = scalar_lea.vmem %s0, %s299
      %p301 = scmp.lt.s32.totalorder %s19, 1
      %s302 = scalar_select %p301, %s19, 1
      %s303 = smul.addr %s302, 2
      %s304 = smul.addr %s303, 4
      %s305 = scalar_lea.vmem %s8, %s304
      %v306 = vld [vmem:[%s300] sm:$0xff]
      %v307 = vld [vmem:[%s1] sm:$0xff]
      %v308 = vld [vmem:[%s1 + $0x8] sm:$0xff]
      %v309 = vld [vmem:[%s1 + $0x10] sm:$0xff]
      %v310 = vld [vmem:[%s2] sm:$0xff]
      %v311 = vld [vmem:[%s2 + $0x8] sm:$0xff]
      %v312 = vld [vmem:[%s2 + $0x10] sm:$0xff]
      %314 = vset.pattern.permute.xlu0 0
      %315 = vperm.xlu0 %314, %v310
      %v316 = vpop.permute.xlu0 %315
      %319 = vset.pattern.permute.xlu0 0
      %320 = vperm.xlu0 %319, %v311
      %v321 = vpop.permute.xlu0 %320
      %324 = vset.pattern.permute.xlu0 0
      %325 = vperm.xlu0 %324, %v312
      %v326 = vpop.permute.xlu0 %325
      %v329 = vcombine.high %v306, %v306
      %vm330 = vcmask 31744
      %v332 = vsel %vm330, %v307, 0
      %v335 = vsel %vm330, %v308, 0
      %v338 = vsel %vm330, %v309, 0
      %vm340 = vcmask 1043456
      %v341 = vsel %vm340, %v306, 0
      %v343 = vsel %vm340, %v329, 0
      %345 = vmatprep.subr.mxu0 0.0
      %346 = vmatpush1.msra.mxu0 0.0
      %347 = vmatprep.subr.mxu0 0.0
      %348 = vmatpush1.msra.mxu0 0.0
      %349 = vmatprep.subr.mxu0 0.0
      %350 = vmatpush1.msra.mxu0 0.0
      %351 = vmatprep.subr.mxu0 0.0
      %352 = vmatpush1.msra.mxu0 0.0
      %353 = vmatprep.subr.mxu0 0.0
      %354 = vmatpush1.msra.mxu0 0.0
      %355 = vmatprep.subr.mxu0 0.0
      %356 = vmatpush1.msra.mxu0 0.0
      %357 = vmatprep.subr.mxu0 0.0
      %358 = vmatpush1.msra.mxu0 0.0
      %359 = vmatprep.subr.mxu0 0.0
      %360 = vmatpush1.msra.mxu0 0.0
      %361 = vmatprep.subr.mxu0 0.0
      %362 = vmatpush1.msra.mxu0 0.0
      %363 = vmatprep.subr.mxu0 0.0
      %364 = vmatpush1.msra.mxu0 0.0
      %365 = vmatprep.subr.mxu0 0.0
      %366 = vmatpush1.msra.mxu0 0.0
      %367 = vmatprep.subr.mxu0 0.0
      %368 = vmatpush1.msra.mxu0 0.0
      %369 = vmatprep.subr.mxu0 0.0
      %370 = vmatpush1.msra.mxu0 0.0
      %371 = vmatprep.subr.mxu0 0.0
      %372 = vmatpush1.msra.mxu0 0.0
      %373 = vmatprep.subr.mxu0 0.0
      %374 = vmatpush1.msra.mxu0 0.0
      %375 = vmatprep.subr.mxu0 %v343
      %376 = vmatpush1.msra.mxu0 %v341
      %377 = vmatprep.subr.mxu0 0.0
      %378 = vmatpush2.msra.mxu0 0.0
      %379 = vmatprep.subr.mxu0 0.0
      %380 = vmatpush2.msra.mxu0 0.0
      %381 = vmatprep.subr.mxu0 0.0
      %382 = vmatpush2.msra.mxu0 0.0
      %383 = vmatprep.subr.mxu0 0.0
      %384 = vmatpush2.msra.mxu0 0.0
      %385 = vmatprep.subr.mxu0 0.0
      %386 = vmatpush2.msra.mxu0 0.0
      %387 = vmatprep.subr.mxu0 0.0
      %388 = vmatpush2.msra.mxu0 0.0
      %389 = vmatprep.subr.mxu0 0.0
      %390 = vmatpush2.msra.mxu0 0.0
      %391 = vmatprep.subr.mxu0 0.0
      %392 = vmatpush2.msra.mxu0 0.0
      %393 = vmatprep.subr.mxu0 0.0
      %394 = vmatpush2.msra.mxu0 0.0
      %395 = vmatprep.subr.mxu0 0.0
      %396 = vmatpush2.msra.mxu0 0.0
      %397 = vmatprep.subr.mxu0 0.0
      %398 = vmatpush2.msra.mxu0 0.0
      %399 = vmatprep.subr.mxu0 0.0
      %400 = vmatpush2.msra.mxu0 0.0
      %401 = vmatprep.subr.mxu0 0.0
      %402 = vmatpush2.msra.mxu0 0.0
      %403 = vmatprep.subr.mxu0 0.0
      %404 = vmatpush2.msra.mxu0 0.0
      %405 = vmatprep.subr.mxu0 0.0
      %406 = vmatpush2.msra.mxu0 0.0
      %407 = vmatprep.subr.mxu0 0.0
      %408 = vmatpush2.msra.mxu0 0.0
      %409 = vmatprep.mubr.f32.mxu0 0.0
      %410 = vmatmul.mubr.f32.gmra.mxu0 %v332
      %v411 = vpop.f32.mrf.mxu0
      %v412 = vadd.f32 %v316, %v411
      %v413 = vpop.f32.mrf.mxu0
      %v414 = vadd.f32 %v316, %v413
      %415 = vmatprep.mubr.f32.mxu0 0.0
      %416 = vmatmul.mubr.f32.gmra.mxu0 %v335
      %v417 = vpop.f32.mrf.mxu0
      %v418 = vadd.f32 %v321, %v417
      %v419 = vpop.f32.mrf.mxu0
      %v420 = vadd.f32 %v321, %v419
      %421 = vmatprep.mubr.f32.mxu0 0.0
      %422 = vmatmul.mubr.f32.gmra.mxu0 %v338
      %v423 = vpop.f32.mrf.mxu0
      %v424 = vadd.f32 %v326, %v423
      %v425 = vpop.f32.mrf.mxu0
      %v426 = vadd.f32 %v326, %v425
      %427 = vdwg.mxu0
      %v428 = vmax.f32 %v412, 0.0
      %v429 = vmax.f32 %v414, 0.0
      %v430 = vmax.f32 %v418, 0.0
      %v431 = vmax.f32 %v420, 0.0
      %v432 = vmax.f32 %v424, 0.0
      %v433 = vmax.f32 %v426, 0.0
      %v434 = vmin.f32 %v428, 6.0
      %v435 = vmin.f32 %v429, 6.0
      %v436 = vmin.f32 %v430, 6.0
      %v437 = vmin.f32 %v431, 6.0
      %v438 = vmin.f32 %v432, 6.0
      %v439 = vmin.f32 %v433, 6.0
      %440 = vrot.lane.b32.xlu0 %v434, 17
      %v441 = vpop.permute.xlu0 %440
      %442 = vrot.lane.b32.xlu0 %v436, 17
      %v443 = vpop.permute.xlu0 %442
      %444 = vrot.lane.b32.xlu0 %v438, 17
      %v445 = vpop.permute.xlu0 %444
      %446 = vrot.lane.b32.xlu0 %v435, 17
      %v447 = vpop.permute.xlu0 %446
      %448 = vrot.lane.b32.xlu0 %v437, 17
      %v449 = vpop.permute.xlu0 %448
      %450 = vrot.lane.b32.xlu0 %v439, 17
      %v451 = vpop.permute.xlu0 %450
      %v452 = vlaneseq
      %v453 = vand.u32 %v452, 127
      %vm454 = vcmp.lt.s32.totalorder %v453, 17
      %v455 = vsel %vm454, %v441, %v447
      %v456 = vsel %vm454, %v443, %v449
      %v457 = vsel %vm454, %v445, %v451
      %v458 = vsel %vm454, %v447, %v441
      %v459 = vsel %vm454, %v449, %v443
      %v460 = vsel %vm454, %v451, %v445
      %v461 = vld [vmem:[%s4] sm:$0x3]
      %v463 = vlaneseq
      %v464 = vshrl.u32 %v463, 7
      %v465 = vsub.s32 0, %v464
      %v466 = vrot.slane %v461, %v465
      %v467 = vlaneseq
      %v468 = vshrl.u32 %v467, 7
      %v469 = vsub.s32 1, %v468
      %v470 = vrot.slane %v461, %v469
      %v473 = vmul.f32 %v458, %v466
      %v474 = vmul.f32 %v455, %v470
      %v475 = vmul.f32 %v459, %v466
      %v476 = vmul.f32 %v456, %v470
      %v477 = vmul.f32 %v460, %v466
      %v478 = vmul.f32 %v457, %v470
      %v479 = vld [vmem:[%s3] sm:$0xff]
      %v480 = vld [vmem:[%s3 + $0x8] sm:$0xff]
      %v481 = vld [vmem:[%s3 + $0x10] sm:$0xff]
      %483 = vset.pattern.permute.xlu0 0
      %484 = vperm.xlu0 %483, %v479
      %v485 = vpop.permute.xlu0 %484
      %488 = vset.pattern.permute.xlu0 0
      %489 = vperm.xlu0 %488, %v480
      %v490 = vpop.permute.xlu0 %489
      %493 = vset.pattern.permute.xlu0 0
      %494 = vperm.xlu0 %493, %v481
      %v495 = vpop.permute.xlu0 %494
      %v497 = vmul.f32 %v473, %v485
      %v498 = vmul.f32 %v474, %v485
      %v499 = vmul.f32 %v475, %v490
      %v500 = vmul.f32 %v476, %v490
      %v501 = vmul.f32 %v477, %v495
      %v502 = vmul.f32 %v478, %v495
      %503 = vrot.lane.b32.xlu0 %v434, 16
      %v504 = vpop.permute.xlu0 %503
      %505 = vrot.lane.b32.xlu0 %v436, 16
      %v506 = vpop.permute.xlu0 %505
      %507 = vrot.lane.b32.xlu0 %v438, 16
      %v508 = vpop.permute.xlu0 %507
      %509 = vrot.lane.b32.xlu0 %v435, 16
      %v510 = vpop.permute.xlu0 %509
      %511 = vrot.lane.b32.xlu0 %v437, 16
      %v512 = vpop.permute.xlu0 %511
      %513 = vrot.lane.b32.xlu0 %v439, 16
      %v514 = vpop.permute.xlu0 %513
      %vm515 = vcmp.lt.s32.totalorder %v453, 16
      %v516 = vsel %vm515, %v504, %v510
      %v517 = vsel %vm515, %v506, %v512
      %v518 = vsel %vm515, %v508, %v514
      %v519 = vsel %vm515, %v510, %v504
      %v520 = vsel %vm515, %v512, %v506
      %v521 = vsel %vm515, %v514, %v508
      %s522 = scalar_lea.vmem %s4, 2
      %v523 = vld [vmem:[%s522] sm:$0x3]
      %v525 = vlaneseq
      %v526 = vshrl.u32 %v525, 7
      %v527 = vsub.s32 0, %v526
      %v528 = vrot.slane %v523, %v527
      %v529 = vlaneseq
      %v530 = vshrl.u32 %v529, 7
      %v531 = vsub.s32 1, %v530
      %v532 = vrot.slane %v523, %v531
      %v535 = vmul.f32 %v519, %v528
      %v536 = vmul.f32 %v516, %v532
      %v537 = vmul.f32 %v520, %v528
      %v538 = vmul.f32 %v517, %v532
      %v539 = vmul.f32 %v521, %v528
      %v540 = vmul.f32 %v518, %v532
      %s541 = scalar_lea.vmem %s3, 24
      %v542 = vld [vmem:[%s541] sm:$0xff]
      %v543 = vld [vmem:[%s541 + $0x8] sm:$0xff]
      %v544 = vld [vmem:[%s541 + $0x10] sm:$0xff]
      %546 = vset.pattern.permute.xlu0 0
      %547 = vperm.xlu0 %546, %v542
      %v548 = vpop.permute.xlu0 %547
      %551 = vset.pattern.permute.xlu0 0
      %552 = vperm.xlu0 %551, %v543
      %v553 = vpop.permute.xlu0 %552
      %556 = vset.pattern.permute.xlu0 0
      %557 = vperm.xlu0 %556, %v544
      %v558 = vpop.permute.xlu0 %557
      %v560 = vmul.f32 %v535, %v548
      %v561 = vmul.f32 %v536, %v548
      %v562 = vmul.f32 %v537, %v553
      %v563 = vmul.f32 %v538, %v553
      %v564 = vmul.f32 %v539, %v558
      %v565 = vmul.f32 %v540, %v558
      %v566 = vadd.f32 %v497, %v560
      %v567 = vadd.f32 %v498, %v561
      %v568 = vadd.f32 %v499, %v562
      %v569 = vadd.f32 %v500, %v563
      %v570 = vadd.f32 %v501, %v564
      %v571 = vadd.f32 %v502, %v565
      %572 = vrot.lane.b32.xlu0 %v434, 15
      %v573 = vpop.permute.xlu0 %572
      %574 = vrot.lane.b32.xlu0 %v436, 15
      %v575 = vpop.permute.xlu0 %574
      %576 = vrot.lane.b32.xlu0 %v438, 15
      %v577 = vpop.permute.xlu0 %576
      %578 = vrot.lane.b32.xlu0 %v435, 15
      %v579 = vpop.permute.xlu0 %578
      %580 = vrot.lane.b32.xlu0 %v437, 15
      %v581 = vpop.permute.xlu0 %580
      %582 = vrot.lane.b32.xlu0 %v439, 15
      %v583 = vpop.permute.xlu0 %582
      %vm584 = vcmp.lt.s32.totalorder %v453, 15
      %v585 = vsel %vm584, %v573, %v579
      %v586 = vsel %vm584, %v575, %v581
      %v587 = vsel %vm584, %v577, %v583
      %v588 = vsel %vm584, %v579, %v573
      %v589 = vsel %vm584, %v581, %v575
      %v590 = vsel %vm584, %v583, %v577
      %s591 = scalar_lea.vmem %s4, 4
      %v592 = vld [vmem:[%s591] sm:$0x3]
      %v594 = vlaneseq
      %v595 = vshrl.u32 %v594, 7
      %v596 = vsub.s32 0, %v595
      %v597 = vrot.slane %v592, %v596
      %v598 = vlaneseq
      %v599 = vshrl.u32 %v598, 7
      %v600 = vsub.s32 1, %v599
      %v601 = vrot.slane %v592, %v600
      %v604 = vmul.f32 %v588, %v597
      %v605 = vmul.f32 %v585, %v601
      %v606 = vmul.f32 %v589, %v597
      %v607 = vmul.f32 %v586, %v601
      %v608 = vmul.f32 %v590, %v597
      %v609 = vmul.f32 %v587, %v601
      %s610 = scalar_lea.vmem %s3, 48
      %v611 = vld [vmem:[%s610] sm:$0xff]
      %v612 = vld [vmem:[%s610 + $0x8] sm:$0xff]
      %v613 = vld [vmem:[%s610 + $0x10] sm:$0xff]
      %615 = vset.pattern.permute.xlu0 0
      %616 = vperm.xlu0 %615, %v611
      %v617 = vpop.permute.xlu0 %616
      %620 = vset.pattern.permute.xlu0 0
      %621 = vperm.xlu0 %620, %v612
      %v622 = vpop.permute.xlu0 %621
      %625 = vset.pattern.permute.xlu0 0
      %626 = vperm.xlu0 %625, %v613
      %v627 = vpop.permute.xlu0 %626
      %v629 = vmul.f32 %v604, %v617
      %v630 = vmul.f32 %v605, %v617
      %v631 = vmul.f32 %v606, %v622
      %v632 = vmul.f32 %v607, %v622
      %v633 = vmul.f32 %v608, %v627
      %v634 = vmul.f32 %v609, %v627
      %v635 = vadd.f32 %v566, %v629
      %v636 = vadd.f32 %v567, %v630
      %v637 = vadd.f32 %v568, %v631
      %v638 = vadd.f32 %v569, %v632
      %v639 = vadd.f32 %v570, %v633
      %v640 = vadd.f32 %v571, %v634
      %641 = vrot.lane.b32.xlu0 %v434, 1
      %v642 = vpop.permute.xlu0 %641
      %643 = vrot.lane.b32.xlu0 %v436, 1
      %v644 = vpop.permute.xlu0 %643
      %645 = vrot.lane.b32.xlu0 %v438, 1
      %v646 = vpop.permute.xlu0 %645
      %647 = vrot.lane.b32.xlu0 %v435, 1
      %v648 = vpop.permute.xlu0 %647
      %649 = vrot.lane.b32.xlu0 %v437, 1
      %v650 = vpop.permute.xlu0 %649
      %651 = vrot.lane.b32.xlu0 %v439, 1
      %v652 = vpop.permute.xlu0 %651
      %vm653 = vcmp.lt.s32.totalorder %v453, 1
      %v654 = vsel %vm653, %v642, %v648
      %v655 = vsel %vm653, %v644, %v650
      %v656 = vsel %vm653, %v646, %v652
      %v657 = vsel %vm653, %v648, %v642
      %v658 = vsel %vm653, %v650, %v644
      %v659 = vsel %vm653, %v652, %v646
      %s660 = scalar_lea.vmem %s4, 6
      %v661 = vld [vmem:[%s660] sm:$0x3]
      %v663 = vlaneseq
      %v664 = vshrl.u32 %v663, 7
      %v665 = vsub.s32 0, %v664
      %v666 = vrot.slane %v661, %v665
      %v667 = vlaneseq
      %v668 = vshrl.u32 %v667, 7
      %v669 = vsub.s32 1, %v668
      %v670 = vrot.slane %v661, %v669
      %v673 = vmul.f32 %v657, %v666
      %v674 = vmul.f32 %v654, %v670
      %v675 = vmul.f32 %v658, %v666
      %v676 = vmul.f32 %v655, %v670
      %v677 = vmul.f32 %v659, %v666
      %v678 = vmul.f32 %v656, %v670
      %s679 = scalar_lea.vmem %s3, 72
      %v680 = vld [vmem:[%s679] sm:$0xff]
      %v681 = vld [vmem:[%s679 + $0x8] sm:$0xff]
      %v682 = vld [vmem:[%s679 + $0x10] sm:$0xff]
      %684 = vset.pattern.permute.xlu0 0
      %685 = vperm.xlu0 %684, %v680
      %v686 = vpop.permute.xlu0 %685
      %689 = vset.pattern.permute.xlu0 0
      %690 = vperm.xlu0 %689, %v681
      %v691 = vpop.permute.xlu0 %690
      %694 = vset.pattern.permute.xlu0 0
      %695 = vperm.xlu0 %694, %v682
      %v696 = vpop.permute.xlu0 %695
      %v698 = vmul.f32 %v673, %v686
      %v699 = vmul.f32 %v674, %v686
      %v700 = vmul.f32 %v675, %v691
      %v701 = vmul.f32 %v676, %v691
      %v702 = vmul.f32 %v677, %v696
      %v703 = vmul.f32 %v678, %v696
      %v704 = vadd.f32 %v635, %v698
      %v705 = vadd.f32 %v636, %v699
      %v706 = vadd.f32 %v637, %v700
      %v707 = vadd.f32 %v638, %v701
      %v708 = vadd.f32 %v639, %v702
      %v709 = vadd.f32 %v640, %v703
      %s710 = scalar_lea.vmem %s3, 96
      %v711 = vld [vmem:[%s710] sm:$0xff]
      %v712 = vld [vmem:[%s710 + $0x8] sm:$0xff]
      %v713 = vld [vmem:[%s710 + $0x10] sm:$0xff]
      %715 = vset.pattern.permute.xlu0 0
      %716 = vperm.xlu0 %715, %v711
      %v717 = vpop.permute.xlu0 %716
      %720 = vset.pattern.permute.xlu0 0
      %721 = vperm.xlu0 %720, %v712
      %v722 = vpop.permute.xlu0 %721
      %725 = vset.pattern.permute.xlu0 0
      %726 = vperm.xlu0 %725, %v713
      %v727 = vpop.permute.xlu0 %726
      %v729 = vmul.f32 %v434, %v717
      %v730 = vmul.f32 %v435, %v717
      %v731 = vmul.f32 %v436, %v722
      %v732 = vmul.f32 %v437, %v722
      %v733 = vmul.f32 %v438, %v727
      %v734 = vmul.f32 %v439, %v727
      %v735 = vadd.f32 %v704, %v729
      %v736 = vadd.f32 %v705, %v730
      %v737 = vadd.f32 %v706, %v731
      %v738 = vadd.f32 %v707, %v732
      %v739 = vadd.f32 %v708, %v733
      %v740 = vadd.f32 %v709, %v734
      %741 = vrot.lane.b32.xlu0 %v434, 127
      %v742 = vpop.permute.xlu0 %741
      %743 = vrot.lane.b32.xlu0 %v436, 127
      %v744 = vpop.permute.xlu0 %743
      %745 = vrot.lane.b32.xlu0 %v438, 127
      %v746 = vpop.permute.xlu0 %745
      %747 = vrot.lane.b32.xlu0 %v435, 127
      %v748 = vpop.permute.xlu0 %747
      %749 = vrot.lane.b32.xlu0 %v437, 127
      %v750 = vpop.permute.xlu0 %749
      %751 = vrot.lane.b32.xlu0 %v439, 127
      %v752 = vpop.permute.xlu0 %751
      %vm753 = vcmp.lt.s32.totalorder %v453, 127
      %v754 = vsel %vm753, %v742, %v748
      %v755 = vsel %vm753, %v744, %v750
      %v756 = vsel %vm753, %v746, %v752
      %v757 = vsel %vm753, %v748, %v742
      %v758 = vsel %vm753, %v750, %v744
      %v759 = vsel %vm753, %v752, %v746
      %s760 = scalar_lea.vmem %s4, 10
      %v761 = vld [vmem:[%s760] sm:$0x3]
      %v763 = vlaneseq
      %v764 = vshrl.u32 %v763, 7
      %v765 = vsub.s32 0, %v764
      %v766 = vrot.slane %v761, %v765
      %v767 = vlaneseq
      %v768 = vshrl.u32 %v767, 7
      %v769 = vsub.s32 1, %v768
      %v770 = vrot.slane %v761, %v769
      %v773 = vmul.f32 %v754, %v766
      %v774 = vmul.f32 %v757, %v770
      %v775 = vmul.f32 %v755, %v766
      %v776 = vmul.f32 %v758, %v770
      %v777 = vmul.f32 %v756, %v766
      %v778 = vmul.f32 %v759, %v770
      %s779 = scalar_lea.vmem %s3, 120
      %v780 = vld [vmem:[%s779] sm:$0xff]
      %v781 = vld [vmem:[%s779 + $0x8] sm:$0xff]
      %v782 = vld [vmem:[%s779 + $0x10] sm:$0xff]
      %784 = vset.pattern.permute.xlu0 0
      %785 = vperm.xlu0 %784, %v780
      %v786 = vpop.permute.xlu0 %785
      %789 = vset.pattern.permute.xlu0 0
      %790 = vperm.xlu0 %789, %v781
      %v791 = vpop.permute.xlu0 %790
      %794 = vset.pattern.permute.xlu0 0
      %795 = vperm.xlu0 %794, %v782
      %v796 = vpop.permute.xlu0 %795
      %v798 = vmul.f32 %v773, %v786
      %v799 = vmul.f32 %v774, %v786
      %v800 = vmul.f32 %v775, %v791
      %v801 = vmul.f32 %v776, %v791
      %v802 = vmul.f32 %v777, %v796
      %v803 = vmul.f32 %v778, %v796
      %v804 = vadd.f32 %v735, %v798
      %v805 = vadd.f32 %v736, %v799
      %v806 = vadd.f32 %v737, %v800
      %v807 = vadd.f32 %v738, %v801
      %v808 = vadd.f32 %v739, %v802
      %v809 = vadd.f32 %v740, %v803
      %810 = vrot.lane.b32.xlu0 %v434, 113
      %v811 = vpop.permute.xlu0 %810
      %812 = vrot.lane.b32.xlu0 %v436, 113
      %v813 = vpop.permute.xlu0 %812
      %814 = vrot.lane.b32.xlu0 %v438, 113
      %v815 = vpop.permute.xlu0 %814
      %816 = vrot.lane.b32.xlu0 %v435, 113
      %v817 = vpop.permute.xlu0 %816
      %818 = vrot.lane.b32.xlu0 %v437, 113
      %v819 = vpop.permute.xlu0 %818
      %820 = vrot.lane.b32.xlu0 %v439, 113
      %v821 = vpop.permute.xlu0 %820
      %vm822 = vcmp.lt.s32.totalorder %v453, 113
      %v823 = vsel %vm822, %v811, %v817
      %v824 = vsel %vm822, %v813, %v819
      %v825 = vsel %vm822, %v815, %v821
      %v826 = vsel %vm822, %v817, %v811
      %v827 = vsel %vm822, %v819, %v813
      %v828 = vsel %vm822, %v821, %v815
      %s829 = scalar_lea.vmem %s4, 12
      %v830 = vld [vmem:[%s829] sm:$0x3]
      %v832 = vlaneseq
      %v833 = vshrl.u32 %v832, 7
      %v834 = vsub.s32 0, %v833
      %v835 = vrot.slane %v830, %v834
      %v836 = vlaneseq
      %v837 = vshrl.u32 %v836, 7
      %v838 = vsub.s32 1, %v837
      %v839 = vrot.slane %v830, %v838
      %v842 = vmul.f32 %v823, %v835
      %v843 = vmul.f32 %v826, %v839
      %v844 = vmul.f32 %v824, %v835
      %v845 = vmul.f32 %v827, %v839
      %v846 = vmul.f32 %v825, %v835
      %v847 = vmul.f32 %v828, %v839
      %s848 = scalar_lea.vmem %s3, 144
      %v849 = vld [vmem:[%s848] sm:$0xff]
      %v850 = vld [vmem:[%s848 + $0x8] sm:$0xff]
      %v851 = vld [vmem:[%s848 + $0x10] sm:$0xff]
      %853 = vset.pattern.permute.xlu0 0
      %854 = vperm.xlu0 %853, %v849
      %v855 = vpop.permute.xlu0 %854
      %858 = vset.pattern.permute.xlu0 0
      %859 = vperm.xlu0 %858, %v850
      %v860 = vpop.permute.xlu0 %859
      %863 = vset.pattern.permute.xlu0 0
      %864 = vperm.xlu0 %863, %v851
      %v865 = vpop.permute.xlu0 %864
      %v867 = vmul.f32 %v842, %v855
      %v868 = vmul.f32 %v843, %v855
      %v869 = vmul.f32 %v844, %v860
      %v870 = vmul.f32 %v845, %v860
      %v871 = vmul.f32 %v846, %v865
      %v872 = vmul.f32 %v847, %v865
      %v873 = vadd.f32 %v804, %v867
      %v874 = vadd.f32 %v805, %v868
      %v875 = vadd.f32 %v806, %v869
      %v876 = vadd.f32 %v807, %v870
      %v877 = vadd.f32 %v808, %v871
      %v878 = vadd.f32 %v809, %v872
      %879 = vrot.lane.b32.xlu0 %v434, 112
      %v880 = vpop.permute.xlu0 %879
      %881 = vrot.lane.b32.xlu0 %v436, 112
      %v882 = vpop.permute.xlu0 %881
      %883 = vrot.lane.b32.xlu0 %v438, 112
      %v884 = vpop.permute.xlu0 %883
      %885 = vrot.lane.b32.xlu0 %v435, 112
      %v886 = vpop.permute.xlu0 %885
      %887 = vrot.lane.b32.xlu0 %v437, 112
      %v888 = vpop.permute.xlu0 %887
      %889 = vrot.lane.b32.xlu0 %v439, 112
      %v890 = vpop.permute.xlu0 %889
      %vm891 = vcmp.lt.s32.totalorder %v453, 112
      %v892 = vsel %vm891, %v880, %v886
      %v893 = vsel %vm891, %v882, %v888
      %v894 = vsel %vm891, %v884, %v890
      %v895 = vsel %vm891, %v886, %v880
      %v896 = vsel %vm891, %v888, %v882
      %v897 = vsel %vm891, %v890, %v884
      %s898 = scalar_lea.vmem %s4, 14
      %v899 = vld [vmem:[%s898] sm:$0x3]
      %v901 = vlaneseq
      %v902 = vshrl.u32 %v901, 7
      %v903 = vsub.s32 0, %v902
      %v904 = vrot.slane %v899, %v903
      %v905 = vlaneseq
      %v906 = vshrl.u32 %v905, 7
      %v907 = vsub.s32 1, %v906
      %v908 = vrot.slane %v899, %v907
      %v911 = vmul.f32 %v892, %v904
      %v912 = vmul.f32 %v895, %v908
      %v913 = vmul.f32 %v893, %v904
      %v914 = vmul.f32 %v896, %v908
      %v915 = vmul.f32 %v894, %v904
      %v916 = vmul.f32 %v897, %v908
      %s917 = scalar_lea.vmem %s3, 168
      %v918 = vld [vmem:[%s917] sm:$0xff]
      %v919 = vld [vmem:[%s917 + $0x8] sm:$0xff]
      %v920 = vld [vmem:[%s917 + $0x10] sm:$0xff]
      %922 = vset.pattern.permute.xlu0 0
      %923 = vperm.xlu0 %922, %v918
      %v924 = vpop.permute.xlu0 %923
      %927 = vset.pattern.permute.xlu0 0
      %928 = vperm.xlu0 %927, %v919
      %v929 = vpop.permute.xlu0 %928
      %932 = vset.pattern.permute.xlu0 0
      %933 = vperm.xlu0 %932, %v920
      %v934 = vpop.permute.xlu0 %933
      %v936 = vmul.f32 %v911, %v924
      %v937 = vmul.f32 %v912, %v924
      %v938 = vmul.f32 %v913, %v929
      %v939 = vmul.f32 %v914, %v929
      %v940 = vmul.f32 %v915, %v934
      %v941 = vmul.f32 %v916, %v934
      %v942 = vadd.f32 %v873, %v936
      %v943 = vadd.f32 %v874, %v937
      %v944 = vadd.f32 %v875, %v938
      %v945 = vadd.f32 %v876, %v939
      %v946 = vadd.f32 %v877, %v940
      %v947 = vadd.f32 %v878, %v941
      %948 = vrot.lane.b32.xlu0 %v434, 111
      %v949 = vpop.permute.xlu0 %948
      %950 = vrot.lane.b32.xlu0 %v436, 111
      %v951 = vpop.permute.xlu0 %950
      %952 = vrot.lane.b32.xlu0 %v438, 111
      %v953 = vpop.permute.xlu0 %952
      %954 = vrot.lane.b32.xlu0 %v435, 111
      %v955 = vpop.permute.xlu0 %954
      %956 = vrot.lane.b32.xlu0 %v437, 111
      %v957 = vpop.permute.xlu0 %956
      %958 = vrot.lane.b32.xlu0 %v439, 111
      %v959 = vpop.permute.xlu0 %958
      %vm960 = vcmp.lt.s32.totalorder %v453, 111
      %v961 = vsel %vm960, %v949, %v955
      %v962 = vsel %vm960, %v951, %v957
      %v963 = vsel %vm960, %v953, %v959
      %v964 = vsel %vm960, %v955, %v949
      %v965 = vsel %vm960, %v957, %v951
      %v966 = vsel %vm960, %v959, %v953
      %s967 = scalar_lea.vmem %s4, 16
      %v968 = vld [vmem:[%s967] sm:$0x3]
      %v970 = vlaneseq
      %v971 = vshrl.u32 %v970, 7
      %v972 = vsub.s32 0, %v971
      %v973 = vrot.slane %v968, %v972
      %v974 = vlaneseq
      %v975 = vshrl.u32 %v974, 7
      %v976 = vsub.s32 1, %v975
      %v977 = vrot.slane %v968, %v976
      %v980 = vmul.f32 %v961, %v973
      %v981 = vmul.f32 %v964, %v977
      %v982 = vmul.f32 %v962, %v973
      %v983 = vmul.f32 %v965, %v977
      %v984 = vmul.f32 %v963, %v973
      %v985 = vmul.f32 %v966, %v977
      %s986 = scalar_lea.vmem %s3, 192
      %v987 = vld [vmem:[%s986] sm:$0xff]
      %v988 = vld [vmem:[%s986 + $0x8] sm:$0xff]
      %v989 = vld [vmem:[%s986 + $0x10] sm:$0xff]
      %991 = vset.pattern.permute.xlu0 0
      %992 = vperm.xlu0 %991, %v987
      %v993 = vpop.permute.xlu0 %992
      %996 = vset.pattern.permute.xlu0 0
      %997 = vperm.xlu0 %996, %v988
      %v998 = vpop.permute.xlu0 %997
      %1001 = vset.pattern.permute.xlu0 0
      %1002 = vperm.xlu0 %1001, %v989
      %v1003 = vpop.permute.xlu0 %1002
      %v1005 = vmul.f32 %v980, %v993
      %v1006 = vmul.f32 %v981, %v993
      %v1007 = vmul.f32 %v982, %v998
      %v1008 = vmul.f32 %v983, %v998
      %v1009 = vmul.f32 %v984, %v1003
      %v1010 = vmul.f32 %v985, %v1003
      %v1011 = vadd.f32 %v942, %v1005
      %v1012 = vadd.f32 %v943, %v1006
      %v1013 = vadd.f32 %v944, %v1007
      %v1014 = vadd.f32 %v945, %v1008
      %v1015 = vadd.f32 %v946, %v1009
      %v1016 = vadd.f32 %v947, %v1010
      %v1017 = vld [vmem:[%s5] sm:$0xff]
      %v1018 = vld [vmem:[%s5 + $0x8] sm:$0xff]
      %v1019 = vld [vmem:[%s5 + $0x10] sm:$0xff]
      %1021 = vset.pattern.permute.xlu0 0
      %1022 = vperm.xlu0 %1021, %v1017
      %v1023 = vpop.permute.xlu0 %1022
      %1026 = vset.pattern.permute.xlu0 0
      %1027 = vperm.xlu0 %1026, %v1018
      %v1028 = vpop.permute.xlu0 %1027
      %1031 = vset.pattern.permute.xlu0 0
      %1032 = vperm.xlu0 %1031, %v1019
      %v1033 = vpop.permute.xlu0 %1032
      %v1035 = vadd.f32 %v1011, %v1023
      %v1036 = vadd.f32 %v1012, %v1023
      %v1037 = vadd.f32 %v1013, %v1028
      %v1038 = vadd.f32 %v1014, %v1028
      %v1039 = vadd.f32 %v1015, %v1033
      %v1040 = vadd.f32 %v1016, %v1033
      %v1041 = vmax.f32 %v1035, 0.0
      %v1042 = vmax.f32 %v1036, 0.0
      %v1043 = vmax.f32 %v1037, 0.0
      %v1044 = vmax.f32 %v1038, 0.0
      %v1045 = vmax.f32 %v1039, 0.0
      %v1046 = vmax.f32 %v1040, 0.0
      %v1047 = vmin.f32 %v1041, 6.0
      %v1048 = vmin.f32 %v1042, 6.0
      %v1049 = vmin.f32 %v1043, 6.0
      %v1050 = vmin.f32 %v1044, 6.0
      %v1051 = vmin.f32 %v1045, 6.0
      %v1052 = vmin.f32 %v1046, 6.0
      %v1053 = vld [vmem:[%s6] sm:$0xf]
      %v1054 = vld [vmem:[%s7] sm:$0xf]
      %1056 = vset.pattern.permute.xlu0 0
      %1057 = vperm.xlu0 %1056, %v1054
      %v1058 = vpop.permute.xlu0 %1057
      %vm1060 = vcmask 195584
      %v1062 = vsel %vm1060, %v1053, 0
      %1064 = vmatprep.subr.mxu0 0.0
      %1065 = vmatpush1.msra.mxu0 0.0
      %1066 = vmatprep.subr.mxu0 0.0
      %1067 = vmatpush1.msra.mxu0 0.0
      %1068 = vmatprep.subr.mxu0 0.0
      %1069 = vmatpush1.msra.mxu0 0.0
      %1070 = vmatprep.subr.mxu0 0.0
      %1071 = vmatpush1.msra.mxu0 0.0
      %1072 = vmatprep.subr.mxu0 0.0
      %1073 = vmatpush1.msra.mxu0 0.0
      %1074 = vmatprep.subr.mxu0 0.0
      %1075 = vmatpush1.msra.mxu0 0.0
      %1076 = vmatprep.subr.mxu0 0.0
      %1077 = vmatpush1.msra.mxu0 0.0
      %1078 = vmatprep.subr.mxu0 0.0
      %1079 = vmatpush1.msra.mxu0 0.0
      %1080 = vmatprep.subr.mxu0 0.0
      %1081 = vmatpush1.msra.mxu0 0.0
      %1082 = vmatprep.subr.mxu0 0.0
      %1083 = vmatpush1.msra.mxu0 0.0
      %1084 = vmatprep.subr.mxu0 0.0
      %1085 = vmatpush1.msra.mxu0 0.0
      %1086 = vmatprep.subr.mxu0 0.0
      %1087 = vmatpush1.msra.mxu0 0.0
      %1088 = vmatprep.subr.mxu0 0.0
      %1089 = vmatpush1.msra.mxu0 0.0
      %1090 = vmatprep.subr.mxu0 %v1052
      %1091 = vmatpush1.msra.mxu0 %v1051
      %1092 = vmatprep.subr.mxu0 %v1050
      %1093 = vmatpush1.msra.mxu0 %v1049
      %1094 = vmatprep.subr.mxu0 %v1048
      %1095 = vmatpush1.msra.mxu0 %v1047
      %1096 = vmatprep.subr.mxu0 0.0
      %1097 = vmatpush2.msra.mxu0 0.0
      %1098 = vmatprep.subr.mxu0 0.0
      %1099 = vmatpush2.msra.mxu0 0.0
      %1100 = vmatprep.subr.mxu0 0.0
      %1101 = vmatpush2.msra.mxu0 0.0
      %1102 = vmatprep.subr.mxu0 0.0
      %1103 = vmatpush2.msra.mxu0 0.0
      %1104 = vmatprep.subr.mxu0 0.0
      %1105 = vmatpush2.msra.mxu0 0.0
      %1106 = vmatprep.subr.mxu0 0.0
      %1107 = vmatpush2.msra.mxu0 0.0
      %1108 = vmatprep.subr.mxu0 0.0
      %1109 = vmatpush2.msra.mxu0 0.0
      %1110 = vmatprep.subr.mxu0 0.0
      %1111 = vmatpush2.msra.mxu0 0.0
      %1112 = vmatprep.subr.mxu0 0.0
      %1113 = vmatpush2.msra.mxu0 0.0
      %1114 = vmatprep.subr.mxu0 0.0
      %1115 = vmatpush2.msra.mxu0 0.0
      %1116 = vmatprep.subr.mxu0 0.0
      %1117 = vmatpush2.msra.mxu0 0.0
      %1118 = vmatprep.subr.mxu0 0.0
      %1119 = vmatpush2.msra.mxu0 0.0
      %1120 = vmatprep.subr.mxu0 0.0
      %1121 = vmatpush2.msra.mxu0 0.0
      %1122 = vmatprep.subr.mxu0 0.0
      %1123 = vmatpush2.msra.mxu0 0.0
      %1124 = vmatprep.subr.mxu0 0.0
      %1125 = vmatpush2.msra.mxu0 0.0
      %1126 = vmatprep.subr.mxu0 0.0
      %1127 = vmatpush2.msra.mxu0 0.0
      %1128 = vmatprep.mubr.f32.mxu0 0.0
      %1129 = vmatmul.mubr.f32.gmra.mxu0 %v1062
      %v1130 = vpop.f32.mrf.mxu0
      %v1131 = vadd.f32 %v1058, %v1130
      %v1132 = vpop.f32.mrf.mxu0
      %v1133 = vadd.f32 %v1058, %v1132
      %1134 = vdwg.mxu0
      %v1136 = vadd.f32 %v1131, %v306
      %v1137 = vadd.f32 %v1133, %v329
      %v1140 = vcombine.low %v1136, %v1137
      %1142 = vst [vmem:[%s305] sm:$0xff] %v1140
      %p1143 = scmp.lt.s32.totalorder %s19, 1
      %s1144 = scalar_select %p1143, %s19, 1
      %s1145 = smul.addr %s1144, 2
      %s1146 = smul.addr %s1145, 4
      %s1147 = scalar_lea.vmem %s8, %s1146
      // Predicated region
      $region53: #{inverted_residual_forward.1} parent=51 // pred_check
        %p1148 = pneg %p210
      $region54: #{inverted_residual_forward.1} parent=51 // pred_check_branch
        %1150 = sbr.rel (%p1148) target = $region56
      $region55: #{inverted_residual_forward.1} parent=51 // pred_region
        _
      $region56: #{inverted_residual_forward.1} parent=51 // pred_fallthru
        _
    $region52: #{inverted_residual_forward.1} parent=5 // pred_fallthru
      _
    %p1151 = scmp.le.s32.totalorder 2, %s14
    // Predicated region
    $region57: #{inverted_residual_forward.1} parent=5 // pred_check
      %p1152 = pneg %p1151
    $region58: #{inverted_residual_forward.1} parent=5 // pred_check_branch
      %1154 = sbr.rel (%p1152) target = $region60
    $region59: #{inverted_residual_forward.1} parent=5 // pred_region
      %s1155 = ssub.s32 %s14, 2
      // Predicated region
      $region61: #{inverted_residual_forward.1} parent=59 // pred_check
        %p1156 = pneg %p216
      $region62: #{inverted_residual_forward.1} parent=59 // pred_check_branch
        %1158 = sbr.rel (%p1156) target = $region64
      $region63: #{inverted_residual_forward.1} parent=59 // pred_region
        %p1159 = scmp.lt.s32.totalorder %s20, 1
        %s1160 = scalar_select %p1159, %s20, 1
        %s1161 = smul.addr %s1160, 2
        %s1162 = smul.addr %s1161, 4
        %s1163 = scalar_lea.vmem %s8, %s1162
      $region64: #{inverted_residual_forward.1} parent=59 // pred_fallthru
        _
    $region60: #{inverted_residual_forward.1} parent=5 // pred_fallthru
      _
  $region6: #{inverted_residual_forward.1} parent=0 // loop_footer
    %s18 = sadd.s32 1, %s14
  $region7: #{inverted_residual_forward.1} parent=0 // loop_footer_branch
    %13 = sbr.rel target = $region3
  $region8: #{inverted_residual_forward.1} parent=0 // loop_exit
    _

</llo_original>
